<compile_context>
chip_gen: v7x
topology: tpu7x:2x2x1
jax: 0.10.0
libtpu: 0.0.40
codegen_flags: <defaults>
</compile_context>

<pallas_src>
from functools import partial
from typing import Optional

import jax
import jax.numpy as jnp
from jax.experimental import pallas as pl
from jax.experimental.pallas import tpu as pltpu


def _round_up(x: int, m: int) -> int:
    return ((x + m - 1) // m) * m


# ----------------------------------------------------------------------------
# Fused kernel: one-hot token gather (MXU) + pos add + LayerNorm (+ projection)
# ----------------------------------------------------------------------------
def _make_kernel(project: bool):
    def kernel(ids_ref, tok_ref, pos_ref, gamma_ref, beta_ref, *rest):
        if project:
            w_ref, bias_ref, o_ref = rest
        else:
            (o_ref,) = rest

        bt, ts, _ = ids_ref.shape
        vp, hid = tok_ref.shape
        rows = bt * ts

        # Token-embedding gather fused as a one-hot matmul on the MXU.
        # bf16 operands (0/1 exact in bf16), f32 accumulate, K = vp = 128.
        # TODO(synk): a real BERT-size vocab would use a per-row DMA gather
        #             from HBM instead of a VMEM-resident one-hot matmul.
        # TODO(synk): out-of-range ids (>= vocab) select a zero row instead of
        #             raising like torch.nn.Embedding.
        ids = ids_ref[...].reshape(rows, 1)                          # (rows, 1)
        onehot = (ids == jax.lax.broadcasted_iota(
            jnp.int32, (rows, vp), 1)).astype(jnp.bfloat16)          # (rows, vp)
        h = jnp.dot(onehot, tok_ref[...],
                    preferred_element_type=jnp.float32)              # (rows, H)

        # Positional embedding add, broadcast over the Bt batch rows.
        h = (h.reshape(bt, ts, hid) + pos_ref[...][None]).reshape(rows, hid)

        # LayerNorm over hidden (single pass; clamp var against cancellation).
        inv_h = 1.0 / hid
        mu = jnp.sum(h, axis=-1, keepdims=True) * inv_h
        ex2 = jnp.sum(h * h, axis=-1, keepdims=True) * inv_h
        var = jnp.maximum(ex2 - mu * mu, 0.0)
        y = (h - mu) * jax.lax.rsqrt(var + 1e-12)   # BERT layer_norm_eps
        y = y * gamma_ref[...] + beta_ref[...]                       # (rows, H)

        if project:
            out = jnp.dot(y.astype(jnp.bfloat16), w_ref[...],
                          preferred_element_type=jnp.float32)
            out = out + bias_ref[...]                                # (rows, D)
        else:
            out = y
        o_ref[...] = out.reshape(bt, ts, -1).astype(o_ref.dtype)

    return kernel


def _vmem_budget(bt: int, tile_s: int, hid: int, vp: int, dout: int,
                 project: bool) -> int:
    """Scoped-VMEM request derived from actual block sizes (+ headroom)."""
    rows = bt * tile_s
    dbl = 2                                      # double-buffered pipeline
    io = dbl * (rows * 4 + tile_s * hid * 4 + rows * dout * 2)  # ids+pos+out
    const = vp * hid * 2 + 2 * hid * 4           # tok table + gamma + beta
    if project:
        const += hid * dout * 2 + dout * 4       # W (bf16) + bias
    interm = 4 * rows * hid * 4                  # live f32 values (h, y, ...)
    total = int((io + const + interm) * 1.25)
    return int(min(96 * 2**20, max(32 * 2**20, total)))


def _choose_bt(batch: int, tile_s: int, n_s_tiles: int) -> int:
    """Largest batch block (divisor of B, row budget ~4K rows) that still
    leaves >= 2 grid steps when possible (v7x has two TensorCores)."""
    bt_cap = max(1, min(batch, 4096 // max(tile_s, 1)))
    cands = [bt for bt in range(1, bt_cap + 1) if batch % bt == 0]
    ok = [bt for bt in cands if (batch // bt) * n_s_tiles >= 2]
    return max(ok) if ok else max(cands)


def _embed_call(ids3, tok_pad, pos_pad, gamma, beta, w, bias,
                *, bt: int, tile_s: int, out_dtype):
    B, s_pad, _ = ids3.shape
    vp, hid = tok_pad.shape
    project = w is not None
    dout = w.shape[1] if project else hid
    grid = (B // bt, s_pad // tile_s)

    in_specs = [
        pl.BlockSpec((bt, tile_s, 1), lambda b, s: (b, s, 0)),   # token ids
        pl.BlockSpec((vp, hid), lambda b, s: (0, 0)),            # tok table
        pl.BlockSpec((tile_s, hid), lambda b, s: (s, 0)),        # pos emb
        pl.BlockSpec((1, hid), lambda b, s: (0, 0)),             # gamma
        pl.BlockSpec((1, hid), lambda b, s: (0, 0)),             # beta
    ]
    args = [ids3, tok_pad, pos_pad, gamma, beta]
    if project:
        in_specs += [
            pl.BlockSpec((hid, dout), lambda b, s: (0, 0)),      # W (bf16)
            pl.BlockSpec((1, dout), lambda b, s: (0, 0)),        # bias
        ]
        args += [w, bias]

    return pl.pallas_call(
        _make_kernel(project),
        out_shape=jax.ShapeDtypeStruct((B, s_pad, dout), out_dtype),
        grid=grid,
        in_specs=in_specs,
        out_specs=pl.BlockSpec((bt, tile_s, dout), lambda b, s: (b, s, 0)),
        compiler_params=pltpu.CompilerParams(
            dimension_semantics=("parallel", "parallel"),
            vmem_limit_bytes=_vmem_budget(bt, tile_s, hid, vp, dout, project)),
    )(*args)


@partial(jax.jit, static_argnames=("bt", "tile_s"))
def _forward(ids, tok_pad, pos_pad, gamma, beta, w, bias, *, bt, tile_s):
    """Jitted end-to-end forward: tiny id prep + fused Pallas kernel (+ slice)
    all in a single XLA program (no standalone wrapper copy kernels)."""
    B, S = ids.shape
    s_pad = _round_up(S, tile_s)
    ids3 = ids.astype(jnp.int32).reshape(B, S, 1)
    if s_pad != S:
        ids3 = jnp.pad(ids3, ((0, 0), (0, s_pad - S), (0, 0)))
    out = _embed_call(ids3, tok_pad, pos_pad, gamma, beta, w, bias,
                      bt=bt, tile_s=tile_s, out_dtype=jnp.bfloat16)
    if s_pad != S:
        out = out[:, :S]
    return out


# ----------------------------------------------------------------------------
# TextEmbedder wrapper (JAX/Pallas)
# ----------------------------------------------------------------------------
class TextEmbedderPallas:
    def __init__(self,
                 vocab_size: int = 64,
                 hidden_size: int = 128,
                 max_length: int = 512,
                 output_dim: Optional[int] = 32,
                 key=None):
        if key is None:
            key = jax.random.PRNGKey(0)
        self.hidden_size = hidden_size
        self.max_length = max_length
        self.output_dim = output_dim

        k_tok, k_pos, k_g, k_b, k_w, k_bias = jax.random.split(key, 6)
        # Deterministic synthetic parameters (stand-in for pretrained weights).
        # TODO(synk): tokenizer + pretrained BERT checkpoint have no Pallas
        #             equivalent; ids are taken as input, encoder is synthetic.
        self.tok_emb = jax.random.normal(k_tok, (vocab_size, hidden_size),
                                         jnp.float32) * 0.02
        self.pos_emb = jax.random.normal(k_pos, (max_length, hidden_size),
                                         jnp.float32) * 0.02
        self.ln_gamma = 1.0 + 0.01 * jax.random.normal(
            k_g, (1, hidden_size), jnp.float32)
        self.ln_beta = 0.01 * jax.random.normal(
            k_b, (1, hidden_size), jnp.float32)

        # Kernel-side constants, padded/cast ONCE here (no per-call pads):
        vp = _round_up(vocab_size, 128)              # full MXU K tile
        self._tok_pad = jnp.pad(
            self.tok_emb, ((0, vp - vocab_size), (0, 0))).astype(jnp.bfloat16)
        lp = _round_up(max_length, 512)              # covers any S_pad choice
        self._pos_pad = jnp.pad(self.pos_emb, ((0, lp - max_length), (0, 0)))

        if output_dim is not None:
            self.proj_w = jax.random.normal(
                k_w, (hidden_size, output_dim), jnp.float32) * (
                    1.0 / jnp.sqrt(hidden_size))
            self.proj_b = 0.01 * jax.random.normal(
                k_bias, (1, output_dim), jnp.float32)
            # True-width (no 128-lane pad) bf16 weight; f32 bias.
            self._w_bf16 = self.proj_w.astype(jnp.bfloat16)
            self._b = self.proj_b
        else:
            self._w_bf16 = None
            self._b = None

    def __call__(self, token_ids: jnp.ndarray) -> jnp.ndarray:
        """token_ids: (batch, seq) int -> (batch, seq, output_dim or hidden),
        bf16 (consumer dtype; halves the HBM write of this mem-bound kernel)."""
        B, S = token_ids.shape
        if S > self.max_length:
            raise ValueError(f"seq_len {S} exceeds max_length {self.max_length}")

        # Sequence tiling: a single tile up to 512 rows (multiple of 8), else
        # 512-row tiles (128-divisible, so the int32 id BlockSpec stays legal).
        tile_s = min(_round_up(S, 8), 512)
        n_s_tiles = _round_up(S, tile_s) // tile_s
        bt = _choose_bt(B, tile_s, n_s_tiles)

        return _forward(token_ids, self._tok_pad, self._pos_pad,
                        self.ln_gamma, self.ln_beta, self._w_bf16, self._b,
                        bt=bt, tile_s=tile_s)


# ----------------------------------------------------------------------------
# Reference (pure JAX, f32) for a sanity check
# ----------------------------------------------------------------------------
def _reference(mod: TextEmbedderPallas, token_ids):
    S = token_ids.shape[1]
    h = jnp.take(mod.tok_emb, token_ids, axis=0) + mod.pos_emb[:S][None]
    mu = jnp.mean(h, axis=-1, keepdims=True)
    var = jnp.mean((h - mu) ** 2, axis=-1, keepdims=True)
    y = (h - mu) * jax.lax.rsqrt(var + 1e-12)
    y = y * mod.ln_gamma[0] + mod.ln_beta[0]
    if mod.output_dim is not None:
        return y @ mod.proj_w + mod.proj_b[0]
    return y


if __name__ == "__main__":
    key = jax.random.PRNGKey(0)
    k_ids, k_params = jax.random.split(key)

    batch, seq = 2, 8
    vocab, hidden, out_dim = 64, 128, 32

    token_ids = jax.random.randint(k_ids, (batch, seq), 0, vocab, jnp.int32)

    # Projection path (output_dim specified).
    module = TextEmbedderPallas(vocab_size=vocab, hidden_size=hidden,
                                max_length=512, output_dim=out_dim,
                                key=k_params)
    emb = jax.block_until_ready(module(token_ids))
    ref = _reference(module, token_ids)
    assert emb.shape == (batch, seq, out_dim), emb.shape
    assert emb.dtype == jnp.bfloat16, emb.dtype
    err = float(jnp.max(jnp.abs(emb.astype(jnp.float32) - ref)))
    assert err < 5e-2, err

    # No-projection path (output_dim=None): embed + LayerNorm only.
    module_np = TextEmbedderPallas(vocab_size=vocab, hidden_size=hidden,
                                   max_length=512, output_dim=None,
                                   key=k_params)
    emb_np = jax.block_until_ready(module_np(token_ids))
    ref_np = _reference(module_np, token_ids)
    assert emb_np.shape == (batch, seq, hidden), emb_np.shape
    err_np = float(jnp.max(jnp.abs(emb_np.astype(jnp.float32) - ref_np)))
    assert err_np < 5e-2, err_np

    print("KERNEL_OK")
</pallas_src>

<mosaic_0001>
module attributes {stable_mosaic.version = 11 : i64} {
  func.func @kernel(%arg0: i32, %arg1: i32, %arg2: memref<1x8x1xi32, #tpu.memory_space<vmem>>, %arg3: memref<128x128xbf16, #tpu.memory_space<vmem>>, %arg4: memref<8x128xf32, #tpu.memory_space<vmem>>, %arg5: memref<1x128xf32, #tpu.memory_space<vmem>>, %arg6: memref<1x128xf32, #tpu.memory_space<vmem>>, %arg7: memref<128x32xbf16, #tpu.memory_space<vmem>>, %arg8: memref<1x32xf32, #tpu.memory_space<vmem>>, %arg9: memref<1x8x32xbf16, #tpu.memory_space<vmem>>) attributes {dimension_semantics = [#tpu.dimension_semantics<parallel>, #tpu.dimension_semantics<parallel>], iteration_bounds = array<i64: 2, 1>, scalar_prefetch = 0 : i64, scratch_operands = 0 : i64, tpu.core_type = #tpu.core_type<tc>, window_params = [{transform_indices = @transform_0, window_bounds = array<i64: 1, 8, 1>}, {pipeline_mode = #tpu.pipeline_mode<synchronous>, transform_indices = @transform_1, window_bounds = array<i64: 128, 128>}, {transform_indices = @transform_2, window_bounds = array<i64: 8, 128>}, {pipeline_mode = #tpu.pipeline_mode<synchronous>, transform_indices = @transform_3, window_bounds = array<i64: 1, 128>}, {pipeline_mode = #tpu.pipeline_mode<synchronous>, transform_indices = @transform_4, window_bounds = array<i64: 1, 128>}, {pipeline_mode = #tpu.pipeline_mode<synchronous>, transform_indices = @transform_5, window_bounds = array<i64: 128, 32>}, {pipeline_mode = #tpu.pipeline_mode<synchronous>, transform_indices = @transform_6, window_bounds = array<i64: 1, 32>}, {transform_indices = @transform_7, window_bounds = array<i64: 1, 8, 32>}]} {
    %c0 = arith.constant 0 : index
    %c0_0 = arith.constant 0 : index
    %c0_1 = arith.constant 0 : index
    %0 = vector.load %arg2[%c0, %c0_0, %c0_1] : memref<1x8x1xi32, #tpu.memory_space<vmem>>, vector<1x8x1xi32>
    %1 = vector.shape_cast %0 : vector<1x8x1xi32> to vector<8x1xi32>
    %2 = tpu.iota {dimensions = array<i32: 1>} : vector<8x128xi32>
    %3 = vector.broadcast %1 : vector<8x1xi32> to vector<8x128xi32>
    %4 = arith.cmpi eq, %3, %2 : vector<8x128xi32>
    %5 = arith.extui %4 : vector<8x128xi1> to vector<8x128xi32>
    %6 = arith.sitofp %5 : vector<8x128xi32> to vector<8x128xf32>
    %7 = arith.truncf %6 : vector<8x128xf32> to vector<8x128xbf16>
    %c0_2 = arith.constant 0 : index
    %c0_3 = arith.constant 0 : index
    %8 = vector.load %arg3[%c0_2, %c0_3] : memref<128x128xbf16, #tpu.memory_space<vmem>>, vector<128x128xbf16>
    %cst = arith.constant dense<0.000000e+00> : vector<8x128xf32>
    %9 = tpu.matmul %7, %8, %cst {dimension_numbers = #tpu.dot_dimension_numbers<[1], [0], [0], [1], [0, 0, 1, 1], [], []>} : vector<8x128xbf16>, vector<128x128xbf16>, vector<8x128xf32> -> vector<8x128xf32>
    %10 = vector.shape_cast %9 : vector<8x128xf32> to vector<1x8x128xf32>
    %c0_4 = arith.constant 0 : index
    %c0_5 = arith.constant 0 : index
    %11 = vector.load %arg4[%c0_4, %c0_5] : memref<8x128xf32, #tpu.memory_space<vmem>>, vector<8x128xf32>
    %12 = vector.shape_cast %11 : vector<8x128xf32> to vector<1x8x128xf32>
    %13 = arith.addf %10, %12 : vector<1x8x128xf32>
    %14 = vector.shape_cast %13 : vector<1x8x128xf32> to vector<8x128xf32>
    %cst_6 = arith.constant dense<0.000000e+00> : vector<8xf32>
    %15 = vector.multi_reduction <add>, %14, %cst_6 [1] : vector<8x128xf32> to vector<8xf32>
    %16 = vector.shape_cast %15 : vector<8xf32> to vector<8x1xf32>
    %cst_7 = arith.constant 7.812500e-03 : f32
    %17 = vector.broadcast %cst_7 : f32 to vector<8x1xf32>
    %18 = arith.mulf %16, %17 : vector<8x1xf32>
    %19 = arith.mulf %14, %14 : vector<8x128xf32>
    %cst_8 = arith.constant dense<0.000000e+00> : vector<8xf32>
    %20 = vector.multi_reduction <add>, %19, %cst_8 [1] : vector<8x128xf32> to vector<8xf32>
    %21 = vector.shape_cast %20 : vector<8xf32> to vector<8x1xf32>
    %cst_9 = arith.constant 7.812500e-03 : f32
    %22 = vector.broadcast %cst_9 : f32 to vector<8x1xf32>
    %23 = arith.mulf %21, %22 : vector<8x1xf32>
    %24 = arith.mulf %18, %18 : vector<8x1xf32>
    %25 = arith.subf %23, %24 : vector<8x1xf32>
    %cst_10 = arith.constant 0.000000e+00 : f32
    %26 = vector.broadcast %cst_10 : f32 to vector<8x1xf32>
    %27 = arith.maximumf %25, %26 : vector<8x1xf32>
    %28 = vector.broadcast %18 : vector<8x1xf32> to vector<8x128xf32>
    %29 = arith.subf %14, %28 : vector<8x128xf32>
    %cst_11 = arith.constant 9.99999996E-13 : f32
    %30 = vector.broadcast %cst_11 : f32 to vector<8x1xf32>
    %31 = arith.addf %27, %30 : vector<8x1xf32>
    %32 = math.rsqrt %31 : vector<8x1xf32>
    %33 = vector.broadcast %32 : vector<8x1xf32> to vector<8x128xf32>
    %34 = arith.mulf %29, %33 : vector<8x128xf32>
    %c0_12 = arith.constant 0 : index
    %c0_13 = arith.constant 0 : index
    %35 = vector.load %arg5[%c0_12, %c0_13] : memref<1x128xf32, #tpu.memory_space<vmem>>, vector<1x128xf32>
    %36 = vector.broadcast %35 : vector<1x128xf32> to vector<8x128xf32>
    %37 = arith.mulf %34, %36 : vector<8x128xf32>
    %c0_14 = arith.constant 0 : index
    %c0_15 = arith.constant 0 : index
    %38 = vector.load %arg6[%c0_14, %c0_15] : memref<1x128xf32, #tpu.memory_space<vmem>>, vector<1x128xf32>
    %39 = vector.broadcast %38 : vector<1x128xf32> to vector<8x128xf32>
    %40 = arith.addf %37, %39 : vector<8x128xf32>
    %41 = arith.truncf %40 : vector<8x128xf32> to vector<8x128xbf16>
    %c0_16 = arith.constant 0 : index
    %c0_17 = arith.constant 0 : index
    %42 = vector.load %arg7[%c0_16, %c0_17] : memref<128x32xbf16, #tpu.memory_space<vmem>>, vector<128x32xbf16>
    %cst_18 = arith.constant dense<0.000000e+00> : vector<8x32xf32>
    %43 = tpu.matmul %41, %42, %cst_18 {dimension_numbers = #tpu.dot_dimension_numbers<[1], [0], [0], [1], [0, 0, 1, 1], [], []>} : vector<8x128xbf16>, vector<128x32xbf16>, vector<8x32xf32> -> vector<8x32xf32>
    %c0_19 = arith.constant 0 : index
    %c0_20 = arith.constant 0 : index
    %44 = vector.load %arg8[%c0_19, %c0_20] : memref<1x32xf32, #tpu.memory_space<vmem>>, vector<1x32xf32>
    %45 = vector.broadcast %44 : vector<1x32xf32> to vector<8x32xf32>
    %46 = arith.addf %43, %45 : vector<8x32xf32>
    %47 = vector.shape_cast %46 : vector<8x32xf32> to vector<1x8x32xf32>
    %48 = arith.truncf %47 : vector<1x8x32xf32> to vector<1x8x32xbf16>
    %c0_21 = arith.constant 0 : index
    %c0_22 = arith.constant 0 : index
    %c0_23 = arith.constant 0 : index
    %49 = vector.load %arg9[%c0_21, %c0_22, %c0_23] : memref<1x8x32xbf16, #tpu.memory_space<vmem>>, vector<1x8x32xbf16>
    tpu.vector_store %arg9[%c0_21, %c0_22, %c0_23], %48 {strides = array<i32>} : memref<1x8x32xbf16, #tpu.memory_space<vmem>>, vector<1x8x32xbf16>,
    return
  }
  func.func @transform_0(%arg0: i32, %arg1: i32) -> (i32, i32, i32) {
    %c0_i32 = arith.constant 0 : i32
    %c0_i32_0 = arith.constant 0 : i32
    return %arg0, %arg1, %c0_i32 : i32, i32, i32
  }
  func.func @transform_1(%arg0: i32, %arg1: i32) -> (i32, i32) {
    %c0_i32 = arith.constant 0 : i32
    %c0_i32_0 = arith.constant 0 : i32
    %c0_i32_1 = arith.constant 0 : i32
    return %c0_i32, %c0_i32_0 : i32, i32
  }
  func.func @transform_2(%arg0: i32, %arg1: i32) -> (i32, i32) {
    %c0_i32 = arith.constant 0 : i32
    %c0_i32_0 = arith.constant 0 : i32
    return %arg1, %c0_i32 : i32, i32
  }
  func.func @transform_3(%arg0: i32, %arg1: i32) -> (i32, i32) {
    %c0_i32 = arith.constant 0 : i32
    %c0_i32_0 = arith.constant 0 : i32
    %c0_i32_1 = arith.constant 0 : i32
    return %c0_i32, %c0_i32_0 : i32, i32
  }
  func.func @transform_4(%arg0: i32, %arg1: i32) -> (i32, i32) {
    %c0_i32 = arith.constant 0 : i32
    %c0_i32_0 = arith.constant 0 : i32
    %c0_i32_1 = arith.constant 0 : i32
    return %c0_i32, %c0_i32_0 : i32, i32
  }
  func.func @transform_5(%arg0: i32, %arg1: i32) -> (i32, i32) {
    %c0_i32 = arith.constant 0 : i32
    %c0_i32_0 = arith.constant 0 : i32
    %c0_i32_1 = arith.constant 0 : i32
    return %c0_i32, %c0_i32_0 : i32, i32
  }
  func.func @transform_6(%arg0: i32, %arg1: i32) -> (i32, i32) {
    %c0_i32 = arith.constant 0 : i32
    %c0_i32_0 = arith.constant 0 : i32
    %c0_i32_1 = arith.constant 0 : i32
    return %c0_i32, %c0_i32_0 : i32, i32
  }
  func.func @transform_7(%arg0: i32, %arg1: i32) -> (i32, i32, i32) {
    %c0_i32 = arith.constant 0 : i32
    %c0_i32_0 = arith.constant 0 : i32
    return %arg0, %arg1, %c0_i32 : i32, i32, i32
  }
}

</mosaic_0001>

<llo_original>
// kernel: _forward.1
$region0: #{_forward.1}
  #allocation0 [shape = 'u32[]', space=smem, size = 0x4, offset = 0x4, fixed_abs, tag = 'smem constant byte address 0x4 - core index']
  #allocation1 [shape = 'u32[144,128]{1,0:T(1,128)}', space=vmem, size = 0x12000, scoped, tag = 'internal scratch']
  %s0 = inlined_call_operand.vmem [shape: s32[2,8,1], index: 0, kind: input, shape index: {}]
  %s1 = inlined_call_operand.vmem [shape: bf16[128,128], index: 1, kind: input, shape index: {}]
  %s2 = inlined_call_operand.hbm [shape: f32[512,128], index: 2, kind: input, shape index: {}]
  %s3 = inlined_call_operand.vmem [shape: f32[1,128], index: 3, kind: input, shape index: {}]
  %s4 = inlined_call_operand.vmem [shape: f32[1,128], index: 4, kind: input, shape index: {}]
  %s5 = inlined_call_operand.vmem [shape: bf16[128,32], index: 5, kind: input, shape index: {}]
  %s6 = inlined_call_operand.vmem [shape: f32[1,32], index: 6, kind: input, shape index: {}]
  %s7 = inlined_call_operand.hbm [shape: bf16[2,8,32], index: 7, kind: output, shape index: {}]
  %s8 = sld [smem:[#allocation0]]
  $region65: #{_forward.1} parent=0
    _
  %s10 = ssub.s32 1, %s8
  %s11 = scalar_select 0, %s10, %s8
  $region1: #{_forward.1} parent=0
    #allocation2 [shape = 'u8[4096]{0}', space=vmem, size = 0x1000, scoped, tag = 'input window, operand 2, single buffered']
    #allocation3 [shape = 's32[2]{0}', space=sflag, size = 0x8, scoped, tag = 'scoped memory for _forward.1']
    #allocation4 [shape = 's32[2]{0}', space=sflag, size = 0x8, scoped, tag = 'scoped memory for _forward.1']
    #allocation5 [shape = 'u8[4096]{0}', space=vmem, size = 0x1000, scoped, tag = 'output window, operand 0']
    %12 = vsyncpa [#allocation3], 0
    %13 = vsyncpa [#allocation4], 0
    %s14 = scalar_lea.sflag [#allocation4], 1
    %15 = vsyncpa %s14, 0
    loop: start=0, step=1, limit=4
    $region2: #{_forward.1} parent=1 // loop_pre_header
      _
    $region3: #{_forward.1} parent=1 // loop_header
      %s17 = sphi 0, %s21
      %p18 = scmp.ge.s32.totalorder %s17, 4
      %s24 = sphi 0, %s36
      %s25 = sphi 0, %s32
      %s26 = sphi 0, %s24
      %s27 = sphi 0, %s25
      %s28 = sphi 0, %s26
      %s29 = sphi 0, %s27
      %s41 = sphi 0, %s43
      %s44 = sphi 0, %s41
      %s45 = sphi 0, %s44
      %s61 = sphi 0, %s45
      %s65 = sphi 0, %s65
      %s67 = sphi 0, %s65
      %s68 = sphi 0, %s67
      %s82 = sphi 0, %s68
      %s88 = sphi 0, %s90
      %s91 = sphi 0, %s88
      %s92 = sphi 0, %s91
      %s108 = sphi 0, %s92
      %s112 = sphi 0, %s112
      %s114 = sphi 0, %s112
      %s115 = sphi 0, %s114
      %s129 = sphi 0, %s115
      %s133 = sphi 0, %s133
      %s135 = sphi 0, %s133
      %s136 = sphi 0, %s135
      %s150 = sphi 0, %s136
      %s154 = sphi 0, %s154
      %s156 = sphi 0, %s154
      %s157 = sphi 0, %s156
      %s171 = sphi 0, %s157
      %s175 = sphi 0, %s175
      %s177 = sphi 0, %s175
      %s178 = sphi 0, %s177
      %s192 = sphi 0, %s178
      %s200 = sphi 0, %s202
      %s203 = sphi 0, %s200
      %s204 = sphi 0, %s203
      %s220 = sphi 0, %s204
    $region4: #{_forward.1} parent=1 // loop_header_branch
      %20 = sbr.rel (%p18) target = $region8
    $region5: #{_forward.1} parent=1 // loop_body
      %s22 = ssub.s32 %s17, 1
      %s23 = ssub.s32 %s17, 2
      %s30 = sadd.s32 1, %s25
      %p31 = scmp.ge.s32.totalorder %s30, 1
      %s32 = scalar_select %p31, 0, %s30
      %s33 = sadd.s32 1, %s24
      %s34 = scalar_select %p31, %s33, %s24
      %p35 = scmp.ge.s32.totalorder %s34, 2
      %s36 = scalar_select %p35, 0, %s34
      %s37 = ssub.s32 %s24, %s36
      %s38 = ssub.s32 %s25, %s32
      %s39 = sor.u32 %s37, %s38
      %p40 = scmp.eq.s32.totalorder %s39, 0
      %s42 = sadd.s32 %s41, 1
      %s43 = scalar_select %p40, %s41, %s42
      %p46 = pneg %p40
      %p47 = scmp.eq.s32.totalorder %s17, 1
      %p48 = por %p46, %p47
      %p49 = scmp.ne.s32.totalorder %s41, %s44
      %p50 = scmp.eq.s32.totalorder %s17, 0
      %p51 = por %p49, %p50
      %p52 = scmp.ne.s32.totalorder %s41, %s44
      %p53 = scmp.eq.s32.totalorder %s22, 1
      %p54 = por %p52, %p53
      %p55 = scmp.ne.s32.totalorder %s44, %s45
      %p56 = scmp.eq.s32.totalorder %s22, 0
      %p57 = por %p55, %p56
      %p58 = scmp.ne.s32.totalorder %s44, %s45
      %p59 = scmp.eq.s32.totalorder %s23, 1
      %p60 = por %p58, %p59
      %p62 = scmp.ne.s32.totalorder %s45, %s61
      %p63 = scmp.eq.s32.totalorder %s23, 0
      %p64 = por %p62, %p63
      %s66 = sadd.s32 %s65, 1
      %p69 = scmp.eq.s32.totalorder %s17, 1
      %p70 = scmp.ne.s32.totalorder %s65, %s67
      %p71 = scmp.eq.s32.totalorder %s17, 0
      %p72 = por %p70, %p71
      %p73 = scmp.ne.s32.totalorder %s65, %s67
      %p74 = scmp.eq.s32.totalorder %s22, 1
      %p75 = por %p73, %p74
      %p76 = scmp.ne.s32.totalorder %s67, %s68
      %p77 = scmp.eq.s32.totalorder %s22, 0
      %p78 = por %p76, %p77
      %p79 = scmp.ne.s32.totalorder %s67, %s68
      %p80 = scmp.eq.s32.totalorder %s23, 1
      %p81 = por %p79, %p80
      %p83 = scmp.ne.s32.totalorder %s68, %s82
      %p84 = scmp.eq.s32.totalorder %s23, 0
      %p85 = por %p83, %p84
      %s86 = ssub.s32 %s25, %s32
      %p87 = scmp.eq.s32.totalorder %s86, 0
      %s89 = sadd.s32 %s88, 1
      %s90 = scalar_select %p87, %s88, %s89
      %p93 = pneg %p87
      %p94 = scmp.eq.s32.totalorder %s17, 1
      %p95 = por %p93, %p94
      %p96 = scmp.ne.s32.totalorder %s88, %s91
      %p97 = scmp.eq.s32.totalorder %s17, 0
      %p98 = por %p96, %p97
      %p99 = scmp.ne.s32.totalorder %s88, %s91
      %p100 = scmp.eq.s32.totalorder %s22, 1
      %p101 = por %p99, %p100
      %p102 = scmp.ne.s32.totalorder %s91, %s92
      %p103 = scmp.eq.s32.totalorder %s22, 0
      %p104 = por %p102, %p103
      %p105 = scmp.ne.s32.totalorder %s91, %s92
      %p106 = scmp.eq.s32.totalorder %s23, 1
      %p107 = por %p105, %p106
      %p109 = scmp.ne.s32.totalorder %s92, %s108
      %p110 = scmp.eq.s32.totalorder %s23, 0
      %p111 = por %p109, %p110
      %s113 = sadd.s32 %s112, 1
      %p116 = scmp.eq.s32.totalorder %s17, 1
      %p117 = scmp.ne.s32.totalorder %s112, %s114
      %p118 = scmp.eq.s32.totalorder %s17, 0
      %p119 = por %p117, %p118
      %p120 = scmp.ne.s32.totalorder %s112, %s114
      %p121 = scmp.eq.s32.totalorder %s22, 1
      %p122 = por %p120, %p121
      %p123 = scmp.ne.s32.totalorder %s114, %s115
      %p124 = scmp.eq.s32.totalorder %s22, 0
      %p125 = por %p123, %p124
      %p126 = scmp.ne.s32.totalorder %s114, %s115
      %p127 = scmp.eq.s32.totalorder %s23, 1
      %p128 = por %p126, %p127
      %p130 = scmp.ne.s32.totalorder %s115, %s129
      %p131 = scmp.eq.s32.totalorder %s23, 0
      %p132 = por %p130, %p131
      %s134 = sadd.s32 %s133, 1
      %p137 = scmp.eq.s32.totalorder %s17, 1
      %p138 = scmp.ne.s32.totalorder %s133, %s135
      %p139 = scmp.eq.s32.totalorder %s17, 0
      %p140 = por %p138, %p139
      %p141 = scmp.ne.s32.totalorder %s133, %s135
      %p142 = scmp.eq.s32.totalorder %s22, 1
      %p143 = por %p141, %p142
      %p144 = scmp.ne.s32.totalorder %s135, %s136
      %p145 = scmp.eq.s32.totalorder %s22, 0
      %p146 = por %p144, %p145
      %p147 = scmp.ne.s32.totalorder %s135, %s136
      %p148 = scmp.eq.s32.totalorder %s23, 1
      %p149 = por %p147, %p148
      %p151 = scmp.ne.s32.totalorder %s136, %s150
      %p152 = scmp.eq.s32.totalorder %s23, 0
      %p153 = por %p151, %p152
      %s155 = sadd.s32 %s154, 1
      %p158 = scmp.eq.s32.totalorder %s17, 1
      %p159 = scmp.ne.s32.totalorder %s154, %s156
      %p160 = scmp.eq.s32.totalorder %s17, 0
      %p161 = por %p159, %p160
      %p162 = scmp.ne.s32.totalorder %s154, %s156
      %p163 = scmp.eq.s32.totalorder %s22, 1
      %p164 = por %p162, %p163
      %p165 = scmp.ne.s32.totalorder %s156, %s157
      %p166 = scmp.eq.s32.totalorder %s22, 0
      %p167 = por %p165, %p166
      %p168 = scmp.ne.s32.totalorder %s156, %s157
      %p169 = scmp.eq.s32.totalorder %s23, 1
      %p170 = por %p168, %p169
      %p172 = scmp.ne.s32.totalorder %s157, %s171
      %p173 = scmp.eq.s32.totalorder %s23, 0
      %p174 = por %p172, %p173
      %s176 = sadd.s32 %s175, 1
      %p179 = scmp.eq.s32.totalorder %s17, 1
      %p180 = scmp.ne.s32.totalorder %s175, %s177
      %p181 = scmp.eq.s32.totalorder %s17, 0
      %p182 = por %p180, %p181
      %p183 = scmp.ne.s32.totalorder %s175, %s177
      %p184 = scmp.eq.s32.totalorder %s22, 1
      %p185 = por %p183, %p184
      %p186 = scmp.ne.s32.totalorder %s177, %s178
      %p187 = scmp.eq.s32.totalorder %s22, 0
      %p188 = por %p186, %p187
      %p189 = scmp.ne.s32.totalorder %s177, %s178
      %p190 = scmp.eq.s32.totalorder %s23, 1
      %p191 = por %p189, %p190
      %p193 = scmp.ne.s32.totalorder %s178, %s192
      %p194 = scmp.eq.s32.totalorder %s23, 0
      %p195 = por %p193, %p194
      %s196 = ssub.s32 %s24, %s36
      %s197 = ssub.s32 %s25, %s32
      %s198 = sor.u32 %s196, %s197
      %p199 = scmp.eq.s32.totalorder %s198, 0
      %s201 = sadd.s32 %s200, 1
      %s202 = scalar_select %p199, %s200, %s201
      %p205 = pneg %p199
      %p206 = scmp.eq.s32.totalorder %s17, 1
      %p207 = por %p205, %p206
      %p208 = scmp.ne.s32.totalorder %s200, %s203
      %p209 = scmp.eq.s32.totalorder %s17, 0
      %p210 = por %p208, %p209
      %p211 = scmp.ne.s32.totalorder %s200, %s203
      %p212 = scmp.eq.s32.totalorder %s22, 1
      %p213 = por %p211, %p212
      %p214 = scmp.ne.s32.totalorder %s203, %s204
      %p215 = scmp.eq.s32.totalorder %s22, 0
      %p216 = por %p214, %p215
      %p217 = scmp.ne.s32.totalorder %s203, %s204
      %p218 = scmp.eq.s32.totalorder %s23, 1
      %p219 = por %p217, %p218
      %p221 = scmp.ne.s32.totalorder %s204, %s220
      %p222 = scmp.eq.s32.totalorder %s23, 0
      %p223 = por %p221, %p222
      %p224 = scmp.le.s32.totalorder 1, %s17
      %p225 = scmp.lt.s32.totalorder %s17, 3
      %p226 = pnand %p224, %p225
      %p227 = pneg %p226
      // Predicated region
      $region9: #{_forward.1} parent=5 // pred_check
        _
      $region10: #{_forward.1} parent=5 // pred_check_branch
        %229 = sbr.rel (%p226) target = $region12
      $region11: #{_forward.1} parent=5 // pred_region
        %s230 = ssub.s32 %s17, 1
        // Predicated region
        $region13: #{_forward.1} parent=11 // pred_check
          %p231 = pneg %p78
        $region14: #{_forward.1} parent=11 // pred_check_branch
          %233 = sbr.rel (%p231) target = $region16
        $region15: #{_forward.1} parent=11 // pred_region
          _
        $region16: #{_forward.1} parent=11 // pred_fallthru
          _
        // Predicated region
        $region17: #{_forward.1} parent=11 // pred_check
          %p234 = pneg %p104
        $region18: #{_forward.1} parent=11 // pred_check_branch
          %236 = sbr.rel (%p234) target = $region20
        $region19: #{_forward.1} parent=11 // pred_region
          %s238 = ssub.s32 128, 128
          %239 = vsyncadd [#allocation3], %s238
          %s240 = smul.addr %s27, 128
          %s241 = scalar_lea.hbm %s2, %s240
          %s243 = sshll.u32 [#allocation2], 4
          %s244 = int_to_ptr.vmem [resolvable:$true] %s243
          %246 = dma.hbm_to_vmem [thread:$0]  %s241, 128, %s244, [#allocation3]
        $region20: #{_forward.1} parent=11 // pred_fallthru
          _
        // Predicated region
        $region21: #{_forward.1} parent=11 // pred_check
          %p247 = pneg %p125
        $region22: #{_forward.1} parent=11 // pred_check_branch
          %249 = sbr.rel (%p247) target = $region24
        $region23: #{_forward.1} parent=11 // pred_region
          _
        $region24: #{_forward.1} parent=11 // pred_fallthru
          _
        // Predicated region
        $region25: #{_forward.1} parent=11 // pred_check
          %p250 = pneg %p146
        $region26: #{_forward.1} parent=11 // pred_check_branch
          %252 = sbr.rel (%p250) target = $region28
        $region27: #{_forward.1} parent=11 // pred_region
          _
        $region28: #{_forward.1} parent=11 // pred_fallthru
          _
        // Predicated region
        $region29: #{_forward.1} parent=11 // pred_check
          %p253 = pneg %p167
        $region30: #{_forward.1} parent=11 // pred_check_branch
          %255 = sbr.rel (%p253) target = $region32
        $region31: #{_forward.1} parent=11 // pred_region
          _
        $region32: #{_forward.1} parent=11 // pred_fallthru
          _
        // Predicated region
        $region33: #{_forward.1} parent=11 // pred_check
          %p256 = pneg %p188
        $region34: #{_forward.1} parent=11 // pred_check_branch
          %258 = sbr.rel (%p256) target = $region36
        $region35: #{_forward.1} parent=11 // pred_region
          _
        $region36: #{_forward.1} parent=11 // pred_fallthru
          _
      $region12: #{_forward.1} parent=5 // pred_fallthru
        _
      %p259 = scmp.lt.s32.totalorder %s17, 2
      // Predicated region
      $region37: #{_forward.1} parent=5 // pred_check
        %p260 = pneg %p259
      $region38: #{_forward.1} parent=5 // pred_check_branch
        %262 = sbr.rel (%p260) target = $region40
      $region39: #{_forward.1} parent=5 // pred_region
        // Predicated region
        $region41: #{_forward.1} parent=39 // pred_check
          %p263 = pneg %p51
        $region42: #{_forward.1} parent=39 // pred_check_branch
          %265 = sbr.rel (%p263) target = $region44
        $region43: #{_forward.1} parent=39 // pred_region
          %p266 = scmp.lt.s32.totalorder %s24, 1
          %s267 = scalar_select %p266, %s24, 1
          %p268 = scmp.lt.s32.totalorder %s25, 0
          %s269 = scalar_select %p268, %s25, 0
          %s270 = sadd.s32 %s269, %s267
          %s271 = smul.addr %s270, 8
          %s272 = scalar_lea.vmem %s0, %s271
        $region44: #{_forward.1} parent=39 // pred_fallthru
          _
      $region40: #{_forward.1} parent=5 // pred_fallthru
        _
      %p273 = scmp.le.s32.totalorder 1, %s17
      %p274 = scmp.lt.s32.totalorder %s17, 3
      %p275 = pnand %p273, %p274
      %p276 = pneg %p275
      // Predicated region
      $region45: #{_forward.1} parent=5 // pred_check
        _
      $region46: #{_forward.1} parent=5 // pred_check_branch
        %278 = sbr.rel (%p275) target = $region48
      $region47: #{_forward.1} parent=5 // pred_region
        %s279 = ssub.s32 %s17, 1
        // Predicated region
        $region49: #{_forward.1} parent=47 // pred_check
          %p280 = pneg %p104
        $region50: #{_forward.1} parent=47 // pred_check_branch
          %282 = sbr.rel (%p280) target = $region52
        $region51: #{_forward.1} parent=47 // pred_region
          %283 = dma.done [#allocation3], 128
        $region52: #{_forward.1} parent=47 // pred_fallthru
          _
        %p284 = scmp.lt.s32.totalorder %s26, 1
        %s285 = scalar_select %p284, %s26, 1
        %p286 = scmp.lt.s32.totalorder %s27, 0
        %s287 = scalar_select %p286, %s27, 0
        %s288 = sadd.s32 %s287, %s285
        %s289 = smul.addr %s288, 8
        %s290 = scalar_lea.vmem %s0, %s289
        %p291 = pneg %p57
        %p292 = pneg %p54
        %p293 = pneg %p78
        %p294 = pneg %p75
        %p295 = pneg %p104
        %p296 = pneg %p101
        %p297 = pneg %p125
        %p298 = pneg %p122
        %p299 = pneg %p146
        %p300 = pneg %p143
        %p301 = pneg %p167
        %p302 = pneg %p164
        %p303 = pneg %p188
        %p304 = pneg %p185
        %p305 = pneg %p216
        %p306 = pneg %p213
        %s307 = sand.u32 %s203, 1
        %s308 = scalar_lea.sflag [#allocation4], %s307
        %s309 = sand.u32 %s203, 1
        %s310 = smul.addr %s309, 4
        %s311 = scalar_lea.vmem [#allocation5], %s310
        %p312 = scmp.lt.s32.totalorder %s26, 1
        %s313 = scalar_select %p312, %s26, 1
        %p314 = scmp.lt.s32.totalorder %s27, 0
        %s315 = scalar_select %p314, %s27, 0
        %s316 = sadd.s32 %s315, %s313
        %s317 = smul.addr %s316, 8
        %s318 = scalar_lea.vmem %s0, %s317
        %v320 = vld [vmem:[%s318] sm:$0xff]
        %v321 = vlaneseq
        %v322 = vand.u32 %v321, 127
        %323 = vset.pattern.permute.xlu0 0
        %324 = vperm.xlu0 %323, %v320
        %v325 = vpop.permute.xlu0 %324
        %vm326 = vcmp.eq.s32.totalorder %v325, %v322
        %v327 = vsel %vm326, 1, 0
        %v328 = vcvt.s32.f32 %v327
        %v329 = vpack.c.bf16 %v328, %v328
        %v330 = vld [vmem:[%s1] sm:$0xf]
        %v331 = vld [vmem:[%s1 + $0x4] sm:$0xf]
        %v332 = vld [vmem:[%s1 + $0x8] sm:$0xf]
        %v333 = vld [vmem:[%s1 + $0xc] sm:$0xf]
        %v334 = vld [vmem:[%s1 + $0x10] sm:$0xf]
        %v335 = vld [vmem:[%s1 + $0x14] sm:$0xf]
        %v336 = vld [vmem:[%s1 + $0x18] sm:$0xf]
        %v337 = vld [vmem:[%s1 + $0x1c] sm:$0xf]
        %v338 = vld [vmem:[%s1 + $0x20] sm:$0xf]
        %v339 = vld [vmem:[%s1 + $0x24] sm:$0xf]
        %v340 = vld [vmem:[%s1 + $0x28] sm:$0xf]
        %v341 = vld [vmem:[%s1 + $0x2c] sm:$0xf]
        %v342 = vld [vmem:[%s1 + $0x30] sm:$0xf]
        %v343 = vld [vmem:[%s1 + $0x34] sm:$0xf]
        %v344 = vld [vmem:[%s1 + $0x38] sm:$0xf]
        %v345 = vld [vmem:[%s1 + $0x3c] sm:$0xf]
        %v362 = vunpack.c.l.b16 %v330
        %v363 = vunpack.c.l.b16 %v331
        %v364 = vunpack.c.l.b16 %v332
        %v365 = vunpack.c.l.b16 %v333
        %v366 = vunpack.c.l.b16 %v334
        %v367 = vunpack.c.l.b16 %v335
        %v368 = vunpack.c.l.b16 %v336
        %v369 = vunpack.c.l.b16 %v337
        %v370 = vunpack.c.l.b16 %v338
        %v371 = vunpack.c.l.b16 %v339
        %v372 = vunpack.c.l.b16 %v340
        %v373 = vunpack.c.l.b16 %v341
        %v374 = vunpack.c.l.b16 %v342
        %v375 = vunpack.c.l.b16 %v343
        %v376 = vunpack.c.l.b16 %v344
        %v377 = vunpack.c.l.b16 %v345
        %v378 = vpack.c.b16 %v363, %v362
        %v379 = vpack.c.b16 %v365, %v364
        %v380 = vpack.c.b16 %v367, %v366
        %v381 = vpack.c.b16 %v369, %v368
        %v382 = vpack.c.b16 %v371, %v370
        %v383 = vpack.c.b16 %v373, %v372
        %v384 = vpack.c.b16 %v375, %v374
        %v385 = vpack.c.b16 %v377, %v376
        %394 = vmatprep.subr.bf16.mxu0 0
        %395 = vmatpush1.bf16.msra.mxu0 %v378
        %396 = vmatprep.subr.bf16.mxu0 0
        %397 = vmatpush1.bf16.msra.mxu0 %v379
        %398 = vmatprep.subr.bf16.mxu0 0
        %399 = vmatpush1.bf16.msra.mxu0 %v380
        %400 = vmatprep.subr.bf16.mxu0 0
        %401 = vmatpush1.bf16.msra.mxu0 %v381
        %402 = vmatprep.subr.bf16.mxu0 0
        %403 = vmatpush1.bf16.msra.mxu0 %v382
        %404 = vmatprep.subr.bf16.mxu0 0
        %405 = vmatpush1.bf16.msra.mxu0 %v383
        %406 = vmatprep.subr.bf16.mxu0 0
        %407 = vmatpush1.bf16.msra.mxu0 %v384
        %408 = vmatprep.subr.bf16.mxu0 0
        %409 = vmatpush1.bf16.msra.mxu0 %v385
        %410 = vmatprep.subr.bf16.mxu0 0
        %411 = vmatpush1.bf16.msra.mxu0 0
        %412 = vmatprep.subr.bf16.mxu0 0
        %413 = vmatpush1.bf16.msra.mxu0 0
        %414 = vmatprep.subr.bf16.mxu0 0
        %415 = vmatpush1.bf16.msra.mxu0 0
        %416 = vmatprep.subr.bf16.mxu0 0
        %417 = vmatpush1.bf16.msra.mxu0 0
        %418 = vmatprep.subr.bf16.mxu0 0
        %419 = vmatpush1.bf16.msra.mxu0 0
        %420 = vmatprep.subr.bf16.mxu0 0
        %421 = vmatpush1.bf16.msra.mxu0 0
        %422 = vmatprep.subr.bf16.mxu0 0
        %423 = vmatpush1.bf16.msra.mxu0 0
        %424 = vmatprep.subr.bf16.mxu0 0
        %425 = vmatpush1.bf16.msra.mxu0 0
        %426 = vmatprep.mubr.bf16.mxu0 0
        %427 = vmatmul.mubr.bf16.gmra.mrb[0].mxu0 %v329
        %v428 = vpop.f32.mrb[0].mxu0
        %v429 = vadd.f32 0.0, %v428
        %v430 = vpop.f32.mrb[0].mxu0
        %v431 = vpop.f32.mrb[0].mxu0
        %v432 = vpop.f32.mrb[0].mxu0
        %433 = vdwg.mxu0
        %v434 = vld [vmem:[#allocation2] sm:$0xff]
        %v435 = vadd.f32 %v429, %v434
        %436 = vadd.xlane.f32.xlu0 %v435
        %v437 = vpop.xlane.xlu0 %436
        %v438 = vmul.f32 %v437, 0.0078125
        %v439 = vmul.f32 %v435, %v435
        %440 = vadd.xlane.f32.xlu0 %v439
        %v441 = vpop.xlane.xlu0 %440
        %v442 = vmul.f32 %v441, 0.0078125
        %v443 = vmul.f32 %v438, %v438
        %v444 = vsub.f32 %v442, %v443
        %v445 = vmax.f32 %v444, 0.0
        %v446 = vsub.f32 %v435, %v438
        %v447 = vadd.f32 %v445, 1e-12
        %v448 = vrsqrt.pop %v447
        %v449 = vmul.f32 %v446, %v448
        %v450 = vld [vmem:[%s3] sm:$0x1]
        %v452 = vlaneseq
        %v453 = vshrl.u32 %v452, 7
        %v454 = vsub.s32 0, %v453
        %v455 = vrot.slane %v450, %v454
        %v457 = vmul.f32 %v449, %v455
        %v458 = vld [vmem:[%s4] sm:$0x1]
        %v460 = vlaneseq
        %v461 = vshrl.u32 %v460, 7
        %v462 = vsub.s32 0, %v461
        %v463 = vrot.slane %v458, %v462
        %v465 = vadd.f32 %v457, %v463
        %v466 = vpack.c.bf16 %v465, %v465
        %v467 = vld [vmem:[%s5] sm:$0xf]
        %v468 = vld [vmem:[%s5 + $0x4] sm:$0xf]
        %v469 = vld [vmem:[%s5 + $0x8] sm:$0xf]
        %v470 = vld [vmem:[%s5 + $0xc] sm:$0xf]
        %v471 = vld [vmem:[%s5 + $0x10] sm:$0xf]
        %v472 = vld [vmem:[%s5 + $0x14] sm:$0xf]
        %v473 = vld [vmem:[%s5 + $0x18] sm:$0xf]
        %v474 = vld [vmem:[%s5 + $0x1c] sm:$0xf]
        %v475 = vld [vmem:[%s5 + $0x20] sm:$0xf]
        %v476 = vld [vmem:[%s5 + $0x24] sm:$0xf]
        %v477 = vld [vmem:[%s5 + $0x28] sm:$0xf]
        %v478 = vld [vmem:[%s5 + $0x2c] sm:$0xf]
        %v479 = vld [vmem:[%s5 + $0x30] sm:$0xf]
        %v480 = vld [vmem:[%s5 + $0x34] sm:$0xf]
        %v481 = vld [vmem:[%s5 + $0x38] sm:$0xf]
        %v482 = vld [vmem:[%s5 + $0x3c] sm:$0xf]
        %v483 = vld [vmem:[%s6] sm:$0x1]
        %v485 = vlaneseq
        %v486 = vshrl.u32 %v485, 7
        %v487 = vsub.s32 0, %v486
        %v488 = vrot.slane %v483, %v487
        %v506 = vunpack.c.l.b16 %v467
        %v507 = vunpack.c.l.b16 %v468
        %v508 = vunpack.c.l.b16 %v469
        %v509 = vunpack.c.l.b16 %v470
        %v510 = vunpack.c.l.b16 %v471
        %v511 = vunpack.c.l.b16 %v472
        %v512 = vunpack.c.l.b16 %v473
        %v513 = vunpack.c.l.b16 %v474
        %v514 = vunpack.c.l.b16 %v475
        %v515 = vunpack.c.l.b16 %v476
        %v516 = vunpack.c.l.b16 %v477
        %v517 = vunpack.c.l.b16 %v478
        %v518 = vunpack.c.l.b16 %v479
        %v519 = vunpack.c.l.b16 %v480
        %v520 = vunpack.c.l.b16 %v481
        %v521 = vunpack.c.l.b16 %v482
        %v522 = vpack.c.b16 %v507, %v506
        %v523 = vpack.c.b16 %v509, %v508
        %v524 = vpack.c.b16 %v511, %v510
        %v525 = vpack.c.b16 %v513, %v512
        %v526 = vpack.c.b16 %v515, %v514
        %v527 = vpack.c.b16 %v517, %v516
        %v528 = vpack.c.b16 %v519, %v518
        %v529 = vpack.c.b16 %v521, %v520
        %538 = vmatprep.subr.bf16.mxu0 0
        %539 = vmatpush1.bf16.msra.mxu0 %v522
        %540 = vmatprep.subr.bf16.mxu0 0
        %541 = vmatpush1.bf16.msra.mxu0 %v523
        %542 = vmatprep.subr.bf16.mxu0 0
        %543 = vmatpush1.bf16.msra.mxu0 %v524
        %544 = vmatprep.subr.bf16.mxu0 0
        %545 = vmatpush1.bf16.msra.mxu0 %v525
        %546 = vmatprep.subr.bf16.mxu0 0
        %547 = vmatpush1.bf16.msra.mxu0 %v526
        %548 = vmatprep.subr.bf16.mxu0 0
        %549 = vmatpush1.bf16.msra.mxu0 %v527
        %550 = vmatprep.subr.bf16.mxu0 0
        %551 = vmatpush1.bf16.msra.mxu0 %v528
        %552 = vmatprep.subr.bf16.mxu0 0
        %553 = vmatpush1.bf16.msra.mxu0 %v529
        %554 = vmatprep.subr.bf16.mxu0 0
        %555 = vmatpush1.bf16.msra.mxu0 0
        %556 = vmatprep.subr.bf16.mxu0 0
        %557 = vmatpush1.bf16.msra.mxu0 0
        %558 = vmatprep.subr.bf16.mxu0 0
        %559 = vmatpush1.bf16.msra.mxu0 0
        %560 = vmatprep.subr.bf16.mxu0 0
        %561 = vmatpush1.bf16.msra.mxu0 0
        %562 = vmatprep.subr.bf16.mxu0 0
        %563 = vmatpush1.bf16.msra.mxu0 0
        %564 = vmatprep.subr.bf16.mxu0 0
        %565 = vmatpush1.bf16.msra.mxu0 0
        %566 = vmatprep.subr.bf16.mxu0 0
        %567 = vmatpush1.bf16.msra.mxu0 0
        %568 = vmatprep.subr.bf16.mxu0 0
        %569 = vmatpush1.bf16.msra.mxu0 0
        %570 = vmatprep.mubr.bf16.mxu0 0
        %571 = vmatmul.mubr.bf16.gmra.mrb[0].mxu0 %v466
        %v572 = vpop.f32.mrb[0].mxu0
        %v573 = vadd.f32 %v488, %v572
        %v574 = vpop.f32.mrb[0].mxu0
        %v575 = vpop.f32.mrb[0].mxu0
        %v576 = vpop.f32.mrb[0].mxu0
        %577 = vdwg.mxu0
        %v578 = vpack.c.bf16 %v573, %v573
        %vm579 = vcmask 257024
        %580 = vst.msk [vmem:[%s311] sm:$0xf] %vm579, %v578
        %s581 = sand.u32 %s203, 1
        %s582 = scalar_lea.sflag [#allocation4], %s581
        %s583 = sand.u32 %s203, 1
        %s584 = smul.addr %s583, 4
        %s585 = scalar_lea.vmem [#allocation5], %s584
        // Predicated region
        $region53: #{_forward.1} parent=47 // pred_check
          %p586 = pneg %p213
        $region54: #{_forward.1} parent=47 // pred_check_branch
          %588 = sbr.rel (%p586) target = $region56
        $region55: #{_forward.1} parent=47 // pred_region
          %s590 = ssub.s32 64, 64
          %591 = vsyncadd %s582, %s590
          %s592 = sadd.s32 %s27, %s26
          %s593 = smul.addr %s592, 64
          %s594 = scalar_lea.hbm %s7, %s593
          %s596 = sshll.u32 %s585, 4
          %s597 = int_to_ptr.vmem [resolvable:$true] %s596
          %599 = dma.vmem_to_hbm [thread:$0]  %s597, 64, %s594, %s582
        $region56: #{_forward.1} parent=47 // pred_fallthru
          _
      $region48: #{_forward.1} parent=5 // pred_fallthru
        _
      %p600 = scmp.le.s32.totalorder 2, %s17
      // Predicated region
      $region57: #{_forward.1} parent=5 // pred_check
        %p601 = pneg %p600
      $region58: #{_forward.1} parent=5 // pred_check_branch
        %603 = sbr.rel (%p601) target = $region60
      $region59: #{_forward.1} parent=5 // pred_region
        %s604 = ssub.s32 %s17, 2
        // Predicated region
        $region61: #{_forward.1} parent=59 // pred_check
          %p605 = pneg %p219
        $region62: #{_forward.1} parent=59 // pred_check_branch
          %607 = sbr.rel (%p605) target = $region64
        $region63: #{_forward.1} parent=59 // pred_region
          %s608 = sand.u32 %s204, 1
          %s609 = scalar_lea.sflag [#allocation4], %s608
          %s610 = sand.u32 %s204, 1
          %s611 = smul.addr %s610, 4
          %s612 = scalar_lea.vmem [#allocation5], %s611
          %613 = dma.done %s609, 64
        $region64: #{_forward.1} parent=59 // pred_fallthru
          _
      $region60: #{_forward.1} parent=5 // pred_fallthru
        _
    $region6: #{_forward.1} parent=1 // loop_footer
      %s21 = sadd.s32 1, %s17
    $region7: #{_forward.1} parent=1 // loop_footer_branch
      %16 = sbr.rel target = $region3
    $region8: #{_forward.1} parent=1 // loop_exit
      _
    %614 = vsyncpa [#allocation3], 1
    %s615 = scalar_lea.sflag [#allocation3], 1
    %616 = vsyncpa %s615, 1
    %617 = vsyncpa [#allocation4], 1
    %s618 = scalar_lea.sflag [#allocation4], 1
    %619 = vsyncpa %s618, 1

</llo_original>
